<compile_context>
chip_gen: v5e
topology: v5e:2x2
jax: 0.10.0
libtpu: 0.0.40
codegen_flags: <defaults>
</compile_context>

<pallas_src>
import functools

import jax
import jax.numpy as jnp
from jax.experimental import pallas as pl
from jax.experimental.pallas import tpu as pltpu


def _round_up(x, m):
    return ((x + m - 1) // m) * m


def _default_tiles():
    """MXU-filling tile sizes per TPU generation: (tn, td)."""
    try:
        kind = jax.devices()[0].device_kind.lower()
    except Exception:  # pragma: no cover - defensive
        kind = ""
    if "v5" in kind:
        return 128, 512      # v5e: 4x128x128 MXU -> 128-row LHS tiles suffice
    return 256, 1024         # v6e / v7x: 2x256x256 MXU


# ---------------------------------------------------------------------------
# Kernels
# ---------------------------------------------------------------------------

def _single_block_kernel(x_ref, w_ref, b_ref, o_ref):
    # Whole (padded) problem resident in VMEM: one MXU matmul + bias add.
    o_ref[...] = (
        jnp.dot(x_ref[...], w_ref[...], preferred_element_type=jnp.float32)
        + b_ref[...]
    )


def _tiled_kernel(x_ref, w_ref, b_ref, o_ref):
    # x_ref: [TN, TD]  bf16 tile of the flattened input
    # w_ref: [TD, Kpad] bf16 tile of the folded weight
    # b_ref: [1, Kpad]  f32 folded bias
    # o_ref: [TN, Kpad] f32 logits block; resident across the D reduction axis
    #                   and used directly as the accumulator (no scratch).
    k = pl.program_id(1)

    @pl.when(k == 0)
    def _():
        o_ref[...] = jnp.broadcast_to(b_ref[...], o_ref.shape)

    o_ref[...] += jnp.dot(x_ref[...], w_ref[...],
                          preferred_element_type=jnp.float32)


# ---------------------------------------------------------------------------
# Init-time parameter preparation (fold + pad ONCE)
# ---------------------------------------------------------------------------

def make_classifier_params(w, b, mean_c, std_c, H, W, *,
                           kpad=128, d_align=256,
                           compute_dtype=jnp.bfloat16):
    """Fold Normalize(mean, std) into the linear head and pad once.

    w: [D, K], b: [K], mean_c/std_c: [C] with D = C*H*W (channel-major
    flatten, matching NCHW .reshape(N, -1)).
    Returns (w_pad [Dpad, Kpad] compute_dtype, b_pad [1, Kpad] f32).
    """
    D, K = w.shape
    hw = H * W
    w = w.astype(jnp.float32)
    b = b.astype(jnp.float32)
    mean_vec = jnp.repeat(mean_c.astype(jnp.float32), hw)           # [D]
    inv_std_vec = jnp.repeat(1.0 / std_c.astype(jnp.float32), hw)   # [D]
    w_fold = w * inv_std_vec[:, None]
    b_fold = b - (mean_vec * inv_std_vec) @ w

    Dpad = _round_up(D, d_align)
    Kpad = _round_up(max(K, 1), kpad)
    w_pad = jnp.zeros((Dpad, Kpad), compute_dtype).at[:D, :K].set(
        w_fold.astype(compute_dtype))
    b_pad = jnp.zeros((1, Kpad), jnp.float32).at[0, :K].set(b_fold)
    return w_pad, b_pad


# ---------------------------------------------------------------------------
# Forward
# ---------------------------------------------------------------------------

def _pad_2d(x2d, n_to, d_to):
    n, d = x2d.shape
    if (n, d) == (n_to, d_to):
        return x2d
    return jnp.zeros((n_to, d_to), x2d.dtype).at[:n, :d].set(x2d)


@functools.partial(jax.jit, static_argnames=("num_classes", "tn", "td"))
def classifier_forward(x_nchw, w_pad, b_pad, *, num_classes, tn=None, td=None):
    """x_nchw: [N, C, H, W]; returns logits [N, num_classes] in f32."""
    N, C, H, W = x_nchw.shape
    D = C * H * W
    Dpad, Kpad = w_pad.shape
    compute_dtype = w_pad.dtype

    tn_def, td_def = _default_tiles()
    tn = tn_def if tn is None else tn
    td = td_def if td is None else td

    # Flatten NCHW -> [N, D] (contiguous, channel-major; matches the fold).
    x_flat = x_nchw.reshape(N, D).astype(compute_dtype)

    # ---------------- small-problem fast path ------------------------------
    # Whole padded problem in a single VMEM-resident block: no reduction
    # axis, no pl.when, no per-grid-step overhead.
    n_small = _round_up(max(N, 1), 8)
    small_bytes = ((n_small * Dpad + Dpad * Kpad) * jnp.dtype(compute_dtype).itemsize
                   + n_small * Kpad * 4)
    if small_bytes <= (4 << 20):
        x_p = _pad_2d(x_flat, n_small, Dpad)
        out = pl.pallas_call(
            _single_block_kernel,
            out_shape=jax.ShapeDtypeStruct((n_small, Kpad), jnp.float32),
            grid=(1,),
            in_specs=[
                pl.BlockSpec((n_small, Dpad), lambda i: (0, 0)),
                pl.BlockSpec((Dpad, Kpad), lambda i: (0, 0)),
                pl.BlockSpec((1, Kpad), lambda i: (0, 0)),
            ],
            out_specs=pl.BlockSpec((n_small, Kpad), lambda i: (0, 0)),
        )(x_p, w_pad, b_pad)
        return out[:N, :num_classes]

    # ---------------- tiled path -------------------------------------------
    # Pick a D tile that divides Dpad (Dpad is a multiple of 256 by init-time
    # construction, so the defaults always land on a multiple of 128).
    td = min(td, Dpad)
    while Dpad % td != 0:
        td //= 2

    # Keep >= 2 blocks on the parallel (batch) axis when the batch allows it,
    # so v7x's two TensorCores both get work.
    while tn > 128 and _round_up(N, tn) // tn < 2:
        tn //= 2
    Npad = _round_up(max(N, 1), tn)

    x_p = _pad_2d(x_flat, Npad, Dpad)

    grid = (Npad // tn, Dpad // td)
    itemsize = jnp.dtype(compute_dtype).itemsize
    cost = pl.CostEstimate(
        flops=2 * Npad * Dpad * Kpad,
        transcendentals=0,
        # weight is re-streamed once per batch-row block
        bytes_accessed=(Npad * Dpad * itemsize
                        + grid[0] * Dpad * Kpad * itemsize
                        + Npad * Kpad * 4),
    )

    out = pl.pallas_call(
        _tiled_kernel,
        out_shape=jax.ShapeDtypeStruct((Npad, Kpad), jnp.float32),
        grid_spec=pltpu.PrefetchScalarGridSpec(
            num_scalar_prefetch=0,
            grid=grid,
            in_specs=[
                pl.BlockSpec((tn, td), lambda i, k: (i, k)),     # x tile
                pl.BlockSpec((td, Kpad), lambda i, k: (k, 0)),   # w tile
                pl.BlockSpec((1, Kpad), lambda i, k: (0, 0)),    # folded bias
            ],
            out_specs=pl.BlockSpec((tn, Kpad), lambda i, k: (i, 0)),
        ),
        compiler_params=pltpu.CompilerParams(
            dimension_semantics=("parallel", "arbitrary"),
        ),
        cost_estimate=cost,
    )(x_p, w_pad, b_pad)

    return out[:N, :num_classes]


if __name__ == "__main__":
    key = jax.random.PRNGKey(0)
    k_x, k_w, k_b = jax.random.split(key, 3)

    # Small shapes consistent with the module: NCHW image with 3 channels
    # (Normalize has a 3-element mean/std), 10-way classification head.
    N, C, H, W = 2, 3, 16, 16
    num_classes = 10
    D = C * H * W

    x = jax.random.uniform(k_x, (N, C, H, W), dtype=jnp.float32)       # image in [0,1]
    w = jax.random.normal(k_w, (D, num_classes), dtype=jnp.float32) * 0.02
    b = jax.random.normal(k_b, (num_classes,), dtype=jnp.float32) * 0.01

    mean_c = jnp.array([0.5, 0.5, 0.5], dtype=jnp.float32)
    std_c = jnp.array([0.5, 0.5, 0.5], dtype=jnp.float32)

    # Fold normalization into the head and pad/cast ONCE (init-time work).
    w_pad, b_pad = make_classifier_params(w, b, mean_c, std_c, H, W)

    logits = classifier_forward(x, w_pad, b_pad, num_classes=num_classes)
    jax.block_until_ready(logits)

    # Reference check in plain JAX (same semantics as the PyTorch module).
    # Tolerance is loosened for the bf16 input/weight cast (f32 accumulation).
    x_norm_ref = (x - mean_c[None, :, None, None]) / std_c[None, :, None, None]
    logits_ref = x_norm_ref.reshape(N, D) @ w + b
    assert logits.shape == (N, num_classes)
    assert jnp.allclose(logits, logits_ref, atol=5e-2, rtol=5e-2), (
        float(jnp.max(jnp.abs(logits - logits_ref))))

    print("KERNEL_OK")
</pallas_src>

<mosaic_0001>
module attributes {stable_mosaic.version = 11 : i64} {
  func.func @_single_block_kernel(%arg0: i32, %arg1: memref<8x768xbf16, #tpu.memory_space<vmem>>, %arg2: memref<768x128xbf16, #tpu.memory_space<vmem>>, %arg3: memref<1x128xf32, #tpu.memory_space<vmem>>, %arg4: memref<8x128xf32, #tpu.memory_space<vmem>>) attributes {dimension_semantics = [#tpu.dimension_semantics<arbitrary>], iteration_bounds = array<i64: 1>, scalar_prefetch = 0 : i64, scratch_operands = 0 : i64, tpu.core_type = #tpu.core_type<tc>, window_params = [{pipeline_mode = #tpu.pipeline_mode<synchronous>, transform_indices = @transform_0, window_bounds = array<i64: 8, 768>}, {pipeline_mode = #tpu.pipeline_mode<synchronous>, transform_indices = @transform_1, window_bounds = array<i64: 768, 128>}, {pipeline_mode = #tpu.pipeline_mode<synchronous>, transform_indices = @transform_2, window_bounds = array<i64: 1, 128>}, {pipeline_mode = #tpu.pipeline_mode<synchronous>, transform_indices = @transform_3, window_bounds = array<i64: 8, 128>}]} {
    %c0 = arith.constant 0 : index
    %c0_0 = arith.constant 0 : index
    %0 = vector.load %arg1[%c0, %c0_0] : memref<8x768xbf16, #tpu.memory_space<vmem>>, vector<8x768xbf16>
    %c0_1 = arith.constant 0 : index
    %c0_2 = arith.constant 0 : index
    %1 = vector.load %arg2[%c0_1, %c0_2] : memref<768x128xbf16, #tpu.memory_space<vmem>>, vector<768x128xbf16>
    %cst = arith.constant dense<0.000000e+00> : vector<8x128xf32>
    %2 = tpu.matmul %0, %1, %cst {dimension_numbers = #tpu.dot_dimension_numbers<[1], [0], [0], [1], [0, 0, 1, 1], [], []>} : vector<8x768xbf16>, vector<768x128xbf16>, vector<8x128xf32> -> vector<8x128xf32>
    %c0_3 = arith.constant 0 : index
    %c0_4 = arith.constant 0 : index
    %3 = vector.load %arg3[%c0_3, %c0_4] : memref<1x128xf32, #tpu.memory_space<vmem>>, vector<1x128xf32>
    %4 = vector.broadcast %3 : vector<1x128xf32> to vector<8x128xf32>
    %5 = arith.addf %2, %4 : vector<8x128xf32>
    %c0_5 = arith.constant 0 : index
    %c0_6 = arith.constant 0 : index
    %6 = vector.load %arg4[%c0_5, %c0_6] : memref<8x128xf32, #tpu.memory_space<vmem>>, vector<8x128xf32>
    tpu.vector_store %arg4[%c0_5, %c0_6], %5 {strides = array<i32>} : memref<8x128xf32, #tpu.memory_space<vmem>>, vector<8x128xf32>,
    return
  }
  func.func @transform_0(%arg0: i32) -> (i32, i32) {
    %c0_i32 = arith.constant 0 : i32
    %c0_i32_0 = arith.constant 0 : i32
    %c0_i32_1 = arith.constant 0 : i32
    return %c0_i32, %c0_i32_0 : i32, i32
  }
  func.func @transform_1(%arg0: i32) -> (i32, i32) {
    %c0_i32 = arith.constant 0 : i32
    %c0_i32_0 = arith.constant 0 : i32
    %c0_i32_1 = arith.constant 0 : i32
    return %c0_i32, %c0_i32_0 : i32, i32
  }
  func.func @transform_2(%arg0: i32) -> (i32, i32) {
    %c0_i32 = arith.constant 0 : i32
    %c0_i32_0 = arith.constant 0 : i32
    %c0_i32_1 = arith.constant 0 : i32
    return %c0_i32, %c0_i32_0 : i32, i32
  }
  func.func @transform_3(%arg0: i32) -> (i32, i32) {
    %c0_i32 = arith.constant 0 : i32
    %c0_i32_0 = arith.constant 0 : i32
    %c0_i32_1 = arith.constant 0 : i32
    return %c0_i32, %c0_i32_0 : i32, i32
  }
}

</mosaic_0001>

<llo_original>
// kernel: classifier_forward.1
$region0: #{classifier_forward.1}
  #allocation0 [shape = 'u32[]', space=smem, size = 0x4, offset = 0x4, fixed_abs, tag = 'smem constant byte address 0x4 - core index']
  #allocation1 [shape = 'u32[72,128]{1,0:T(1,128)}', space=vmem, size = 0x9000, scoped, tag = 'internal scratch']
  %s0 = inlined_call_operand.vmem [shape: bf16[8,768], index: 0, kind: input, shape index: {}]
  %s1 = inlined_call_operand.hbm [shape: bf16[768,128], index: 1, kind: input, shape index: {}]
  %s2 = inlined_call_operand.vmem [shape: f32[1,128], index: 2, kind: input, shape index: {}]
  %s3 = inlined_call_operand.vmem [shape: f32[8,128], index: 3, kind: output, shape index: {}]
  %s4 = sld [smem:[#allocation0]]
  $region26: #{classifier_forward.1} parent=0
    _
  %s6 = ssub.s32 1, %s4
  %s7 = scalar_select 0, %s6, %s4
  $region1: #{classifier_forward.1} parent=0
    #allocation2 [shape = 'u8[196608]{0}', space=vmem, size = 0x30000, scoped, tag = 'input window, operand 1, single buffered']
    #allocation3 [shape = 's32[1]{0}', space=sflag, size = 0x4, scoped, tag = 'scoped memory for classifier_forward.1']
    %8 = vsyncpa [#allocation3], 0
    // Predicated region
    $region2: #{classifier_forward.1} parent=1 // pred_check
      _
    $region3: #{classifier_forward.1} parent=1 // pred_check_branch
      %10 = sbr.rel (0) target = $region5
    $region4: #{classifier_forward.1} parent=1 // pred_region
      _
    $region5: #{classifier_forward.1} parent=1 // pred_fallthru
      _
    // Predicated region
    $region6: #{classifier_forward.1} parent=1 // pred_check
      _
    $region7: #{classifier_forward.1} parent=1 // pred_check_branch
      %12 = sbr.rel (0) target = $region9
    $region8: #{classifier_forward.1} parent=1 // pred_region
      %14 = vsyncadd [#allocation3], 0
      %s15 = sshll.u32 %s1, 4
      %s16 = int_to_ptr.hbm [resolvable:$true] %s15
      %s17 = sshll.u32 [#allocation2], 4
      %s18 = int_to_ptr.vmem [resolvable:$true] %s17
      %23 = dma.hbm_to_vmem [thread:$0]  %s16, 6144, %s18, [#allocation3], 64, 64, 4
    $region9: #{classifier_forward.1} parent=1 // pred_fallthru
      _
    // Predicated region
    $region10: #{classifier_forward.1} parent=1 // pred_check
      _
    $region11: #{classifier_forward.1} parent=1 // pred_check_branch
      %25 = sbr.rel (0) target = $region13
    $region12: #{classifier_forward.1} parent=1 // pred_region
      _
    $region13: #{classifier_forward.1} parent=1 // pred_fallthru
      _
    // Predicated region
    $region14: #{classifier_forward.1} parent=1 // pred_check
      _
    $region15: #{classifier_forward.1} parent=1 // pred_check_branch
      %27 = sbr.rel (0) target = $region17
    $region16: #{classifier_forward.1} parent=1 // pred_region
      %29 = dma.done [#allocation3], 6144
    $region17: #{classifier_forward.1} parent=1 // pred_fallthru
      _
    %v30 = vld [vmem:[%s0] sm:$0xff]
    %v31 = vld [vmem:[%s0 + $0x8] sm:$0xff]
    %v32 = vld [vmem:[%s0 + $0x10] sm:$0xff]
    %v33 = vld [vmem:[#allocation2] sm:$0xf]
    %v34 = vld [vmem:[#allocation2 + $0x4] sm:$0xf]
    %v35 = vld [vmem:[#allocation2 + $0x8] sm:$0xf]
    %v36 = vld [vmem:[#allocation2 + $0xc] sm:$0xf]
    %v37 = vld [vmem:[#allocation2 + $0x10] sm:$0xf]
    %v38 = vld [vmem:[#allocation2 + $0x14] sm:$0xf]
    %v39 = vld [vmem:[#allocation2 + $0x18] sm:$0xf]
    %v40 = vld [vmem:[#allocation2 + $0x1c] sm:$0xf]
    %v41 = vld [vmem:[#allocation2 + $0x20] sm:$0xf]
    %v42 = vld [vmem:[#allocation2 + $0x24] sm:$0xf]
    %v43 = vld [vmem:[#allocation2 + $0x28] sm:$0xf]
    %v44 = vld [vmem:[#allocation2 + $0x2c] sm:$0xf]
    %v45 = vld [vmem:[#allocation2 + $0x30] sm:$0xf]
    %v46 = vld [vmem:[#allocation2 + $0x34] sm:$0xf]
    %v47 = vld [vmem:[#allocation2 + $0x38] sm:$0xf]
    %v48 = vld [vmem:[#allocation2 + $0x3c] sm:$0xf]
    %v49 = vld [vmem:[#allocation2 + $0x40] sm:$0xf]
    %v50 = vld [vmem:[#allocation2 + $0x44] sm:$0xf]
    %v51 = vld [vmem:[#allocation2 + $0x48] sm:$0xf]
    %v52 = vld [vmem:[#allocation2 + $0x4c] sm:$0xf]
    %v53 = vld [vmem:[#allocation2 + $0x50] sm:$0xf]
    %v54 = vld [vmem:[#allocation2 + $0x54] sm:$0xf]
    %v55 = vld [vmem:[#allocation2 + $0x58] sm:$0xf]
    %v56 = vld [vmem:[#allocation2 + $0x5c] sm:$0xf]
    %v57 = vld [vmem:[#allocation2 + $0x60] sm:$0xf]
    %v58 = vld [vmem:[#allocation2 + $0x64] sm:$0xf]
    %v59 = vld [vmem:[#allocation2 + $0x68] sm:$0xf]
    %v60 = vld [vmem:[#allocation2 + $0x6c] sm:$0xf]
    %v61 = vld [vmem:[#allocation2 + $0x70] sm:$0xf]
    %v62 = vld [vmem:[#allocation2 + $0x74] sm:$0xf]
    %v63 = vld [vmem:[#allocation2 + $0x78] sm:$0xf]
    %v64 = vld [vmem:[#allocation2 + $0x7c] sm:$0xf]
    %v65 = vld [vmem:[#allocation2 + $0x80] sm:$0xf]
    %v66 = vld [vmem:[#allocation2 + $0x84] sm:$0xf]
    %v67 = vld [vmem:[#allocation2 + $0x88] sm:$0xf]
    %v68 = vld [vmem:[#allocation2 + $0x8c] sm:$0xf]
    %v69 = vld [vmem:[#allocation2 + $0x90] sm:$0xf]
    %v70 = vld [vmem:[#allocation2 + $0x94] sm:$0xf]
    %v71 = vld [vmem:[#allocation2 + $0x98] sm:$0xf]
    %v72 = vld [vmem:[#allocation2 + $0x9c] sm:$0xf]
    %v73 = vld [vmem:[#allocation2 + $0xa0] sm:$0xf]
    %v74 = vld [vmem:[#allocation2 + $0xa4] sm:$0xf]
    %v75 = vld [vmem:[#allocation2 + $0xa8] sm:$0xf]
    %v76 = vld [vmem:[#allocation2 + $0xac] sm:$0xf]
    %v77 = vld [vmem:[#allocation2 + $0xb0] sm:$0xf]
    %v78 = vld [vmem:[#allocation2 + $0xb4] sm:$0xf]
    %v79 = vld [vmem:[#allocation2 + $0xb8] sm:$0xf]
    %v80 = vld [vmem:[#allocation2 + $0xbc] sm:$0xf]
    %v81 = vld [vmem:[#allocation2 + $0xc0] sm:$0xf]
    %v82 = vld [vmem:[#allocation2 + $0xc4] sm:$0xf]
    %v83 = vld [vmem:[#allocation2 + $0xc8] sm:$0xf]
    %v84 = vld [vmem:[#allocation2 + $0xcc] sm:$0xf]
    %v85 = vld [vmem:[#allocation2 + $0xd0] sm:$0xf]
    %v86 = vld [vmem:[#allocation2 + $0xd4] sm:$0xf]
    %v87 = vld [vmem:[#allocation2 + $0xd8] sm:$0xf]
    %v88 = vld [vmem:[#allocation2 + $0xdc] sm:$0xf]
    %v89 = vld [vmem:[#allocation2 + $0xe0] sm:$0xf]
    %v90 = vld [vmem:[#allocation2 + $0xe4] sm:$0xf]
    %v91 = vld [vmem:[#allocation2 + $0xe8] sm:$0xf]
    %v92 = vld [vmem:[#allocation2 + $0xec] sm:$0xf]
    %v93 = vld [vmem:[#allocation2 + $0xf0] sm:$0xf]
    %v94 = vld [vmem:[#allocation2 + $0xf4] sm:$0xf]
    %v95 = vld [vmem:[#allocation2 + $0xf8] sm:$0xf]
    %v96 = vld [vmem:[#allocation2 + $0xfc] sm:$0xf]
    %v97 = vld [vmem:[#allocation2 + $0x100] sm:$0xf]
    %v98 = vld [vmem:[#allocation2 + $0x104] sm:$0xf]
    %v99 = vld [vmem:[#allocation2 + $0x108] sm:$0xf]
    %v100 = vld [vmem:[#allocation2 + $0x10c] sm:$0xf]
    %v101 = vld [vmem:[#allocation2 + $0x110] sm:$0xf]
    %v102 = vld [vmem:[#allocation2 + $0x114] sm:$0xf]
    %v103 = vld [vmem:[#allocation2 + $0x118] sm:$0xf]
    %v104 = vld [vmem:[#allocation2 + $0x11c] sm:$0xf]
    %v105 = vld [vmem:[#allocation2 + $0x120] sm:$0xf]
    %v106 = vld [vmem:[#allocation2 + $0x124] sm:$0xf]
    %v107 = vld [vmem:[#allocation2 + $0x128] sm:$0xf]
    %v108 = vld [vmem:[#allocation2 + $0x12c] sm:$0xf]
    %v109 = vld [vmem:[#allocation2 + $0x130] sm:$0xf]
    %v110 = vld [vmem:[#allocation2 + $0x134] sm:$0xf]
    %v111 = vld [vmem:[#allocation2 + $0x138] sm:$0xf]
    %v112 = vld [vmem:[#allocation2 + $0x13c] sm:$0xf]
    %v113 = vld [vmem:[#allocation2 + $0x140] sm:$0xf]
    %v114 = vld [vmem:[#allocation2 + $0x144] sm:$0xf]
    %v115 = vld [vmem:[#allocation2 + $0x148] sm:$0xf]
    %v116 = vld [vmem:[#allocation2 + $0x14c] sm:$0xf]
    %v117 = vld [vmem:[#allocation2 + $0x150] sm:$0xf]
    %v118 = vld [vmem:[#allocation2 + $0x154] sm:$0xf]
    %v119 = vld [vmem:[#allocation2 + $0x158] sm:$0xf]
    %v120 = vld [vmem:[#allocation2 + $0x15c] sm:$0xf]
    %v121 = vld [vmem:[#allocation2 + $0x160] sm:$0xf]
    %v122 = vld [vmem:[#allocation2 + $0x164] sm:$0xf]
    %v123 = vld [vmem:[#allocation2 + $0x168] sm:$0xf]
    %v124 = vld [vmem:[#allocation2 + $0x16c] sm:$0xf]
    %v125 = vld [vmem:[#allocation2 + $0x170] sm:$0xf]
    %v126 = vld [vmem:[#allocation2 + $0x174] sm:$0xf]
    %v127 = vld [vmem:[#allocation2 + $0x178] sm:$0xf]
    %v128 = vld [vmem:[#allocation2 + $0x17c] sm:$0xf]
    %v129 = vld [vmem:[%s2] sm:$0x1]
    %v131 = vperm.slane %v129, 0
    %v136 = vunpack.c.l.b16 %v30
    %v137 = vunpack.c.h.b16 %v30
    %v138 = vunpack.c.l.b16 %v31
    %v139 = vunpack.c.h.b16 %v31
    %v140 = vunpack.c.l.b16 %v32
    %v141 = vunpack.c.h.b16 %v32
    %v142 = vpack.c.b16 %v136, %v136
    %v143 = vpack.c.b16 %v137, %v137
    %v144 = vpack.c.b16 %v138, %v138
    %v145 = vpack.c.b16 %v139, %v139
    %v146 = vpack.c.b16 %v140, %v140
    %v147 = vpack.c.b16 %v141, %v141
    %v250 = vunpack.c.l.b16 %v33
    %v251 = vunpack.c.l.b16 %v34
    %v252 = vunpack.c.l.b16 %v35
    %v253 = vunpack.c.l.b16 %v36
    %v254 = vunpack.c.l.b16 %v37
    %v255 = vunpack.c.l.b16 %v38
    %v256 = vunpack.c.l.b16 %v39
    %v257 = vunpack.c.l.b16 %v40
    %v258 = vunpack.c.l.b16 %v41
    %v259 = vunpack.c.l.b16 %v42
    %v260 = vunpack.c.l.b16 %v43
    %v261 = vunpack.c.l.b16 %v44
    %v262 = vunpack.c.l.b16 %v45
    %v263 = vunpack.c.l.b16 %v46
    %v264 = vunpack.c.l.b16 %v47
    %v265 = vunpack.c.l.b16 %v48
    %v266 = vunpack.c.l.b16 %v49
    %v267 = vunpack.c.l.b16 %v50
    %v268 = vunpack.c.l.b16 %v51
    %v269 = vunpack.c.l.b16 %v52
    %v270 = vunpack.c.l.b16 %v53
    %v271 = vunpack.c.l.b16 %v54
    %v272 = vunpack.c.l.b16 %v55
    %v273 = vunpack.c.l.b16 %v56
    %v274 = vunpack.c.l.b16 %v57
    %v275 = vunpack.c.l.b16 %v58
    %v276 = vunpack.c.l.b16 %v59
    %v277 = vunpack.c.l.b16 %v60
    %v278 = vunpack.c.l.b16 %v61
    %v279 = vunpack.c.l.b16 %v62
    %v280 = vunpack.c.l.b16 %v63
    %v281 = vunpack.c.l.b16 %v64
    %v282 = vunpack.c.l.b16 %v65
    %v283 = vunpack.c.l.b16 %v66
    %v284 = vunpack.c.l.b16 %v67
    %v285 = vunpack.c.l.b16 %v68
    %v286 = vunpack.c.l.b16 %v69
    %v287 = vunpack.c.l.b16 %v70
    %v288 = vunpack.c.l.b16 %v71
    %v289 = vunpack.c.l.b16 %v72
    %v290 = vunpack.c.l.b16 %v73
    %v291 = vunpack.c.l.b16 %v74
    %v292 = vunpack.c.l.b16 %v75
    %v293 = vunpack.c.l.b16 %v76
    %v294 = vunpack.c.l.b16 %v77
    %v295 = vunpack.c.l.b16 %v78
    %v296 = vunpack.c.l.b16 %v79
    %v297 = vunpack.c.l.b16 %v80
    %v298 = vunpack.c.l.b16 %v81
    %v299 = vunpack.c.l.b16 %v82
    %v300 = vunpack.c.l.b16 %v83
    %v301 = vunpack.c.l.b16 %v84
    %v302 = vunpack.c.l.b16 %v85
    %v303 = vunpack.c.l.b16 %v86
    %v304 = vunpack.c.l.b16 %v87
    %v305 = vunpack.c.l.b16 %v88
    %v306 = vunpack.c.l.b16 %v89
    %v307 = vunpack.c.l.b16 %v90
    %v308 = vunpack.c.l.b16 %v91
    %v309 = vunpack.c.l.b16 %v92
    %v310 = vunpack.c.l.b16 %v93
    %v311 = vunpack.c.l.b16 %v94
    %v312 = vunpack.c.l.b16 %v95
    %v313 = vunpack.c.l.b16 %v96
    %v314 = vunpack.c.l.b16 %v97
    %v315 = vunpack.c.l.b16 %v98
    %v316 = vunpack.c.l.b16 %v99
    %v317 = vunpack.c.l.b16 %v100
    %v318 = vunpack.c.l.b16 %v101
    %v319 = vunpack.c.l.b16 %v102
    %v320 = vunpack.c.l.b16 %v103
    %v321 = vunpack.c.l.b16 %v104
    %v322 = vunpack.c.l.b16 %v105
    %v323 = vunpack.c.l.b16 %v106
    %v324 = vunpack.c.l.b16 %v107
    %v325 = vunpack.c.l.b16 %v108
    %v326 = vunpack.c.l.b16 %v109
    %v327 = vunpack.c.l.b16 %v110
    %v328 = vunpack.c.l.b16 %v111
    %v329 = vunpack.c.l.b16 %v112
    %v330 = vunpack.c.l.b16 %v113
    %v331 = vunpack.c.l.b16 %v114
    %v332 = vunpack.c.l.b16 %v115
    %v333 = vunpack.c.l.b16 %v116
    %v334 = vunpack.c.l.b16 %v117
    %v335 = vunpack.c.l.b16 %v118
    %v336 = vunpack.c.l.b16 %v119
    %v337 = vunpack.c.l.b16 %v120
    %v338 = vunpack.c.l.b16 %v121
    %v339 = vunpack.c.l.b16 %v122
    %v340 = vunpack.c.l.b16 %v123
    %v341 = vunpack.c.l.b16 %v124
    %v342 = vunpack.c.l.b16 %v125
    %v343 = vunpack.c.l.b16 %v126
    %v344 = vunpack.c.l.b16 %v127
    %v345 = vunpack.c.l.b16 %v128
    %v346 = vpack.c.b16 %v251, %v250
    %v347 = vpack.c.b16 %v253, %v252
    %v348 = vpack.c.b16 %v255, %v254
    %v349 = vpack.c.b16 %v257, %v256
    %v350 = vpack.c.b16 %v259, %v258
    %v351 = vpack.c.b16 %v261, %v260
    %v352 = vpack.c.b16 %v263, %v262
    %v353 = vpack.c.b16 %v265, %v264
    %v354 = vpack.c.b16 %v267, %v266
    %v355 = vpack.c.b16 %v269, %v268
    %v356 = vpack.c.b16 %v271, %v270
    %v357 = vpack.c.b16 %v273, %v272
    %v358 = vpack.c.b16 %v275, %v274
    %v359 = vpack.c.b16 %v277, %v276
    %v360 = vpack.c.b16 %v279, %v278
    %v361 = vpack.c.b16 %v281, %v280
    %v362 = vpack.c.b16 %v283, %v282
    %v363 = vpack.c.b16 %v285, %v284
    %v364 = vpack.c.b16 %v287, %v286
    %v365 = vpack.c.b16 %v289, %v288
    %v366 = vpack.c.b16 %v291, %v290
    %v367 = vpack.c.b16 %v293, %v292
    %v368 = vpack.c.b16 %v295, %v294
    %v369 = vpack.c.b16 %v297, %v296
    %v370 = vpack.c.b16 %v299, %v298
    %v371 = vpack.c.b16 %v301, %v300
    %v372 = vpack.c.b16 %v303, %v302
    %v373 = vpack.c.b16 %v305, %v304
    %v374 = vpack.c.b16 %v307, %v306
    %v375 = vpack.c.b16 %v309, %v308
    %v376 = vpack.c.b16 %v311, %v310
    %v377 = vpack.c.b16 %v313, %v312
    %v378 = vpack.c.b16 %v315, %v314
    %v379 = vpack.c.b16 %v317, %v316
    %v380 = vpack.c.b16 %v319, %v318
    %v381 = vpack.c.b16 %v321, %v320
    %v382 = vpack.c.b16 %v323, %v322
    %v383 = vpack.c.b16 %v325, %v324
    %v384 = vpack.c.b16 %v327, %v326
    %v385 = vpack.c.b16 %v329, %v328
    %v386 = vpack.c.b16 %v331, %v330
    %v387 = vpack.c.b16 %v333, %v332
    %v388 = vpack.c.b16 %v335, %v334
    %v389 = vpack.c.b16 %v337, %v336
    %v390 = vpack.c.b16 %v339, %v338
    %v391 = vpack.c.b16 %v341, %v340
    %v392 = vpack.c.b16 %v343, %v342
    %v393 = vpack.c.b16 %v345, %v344
    %442 = vmatpush.bf16.msra.mxu0 %v353
    %443 = vmatpush.bf16.msra.mxu0 %v352
    %444 = vmatpush.bf16.msra.mxu0 %v351
    %445 = vmatpush.bf16.msra.mxu0 %v350
    %446 = vmatpush.bf16.msra.mxu0 %v349
    %447 = vmatpush.bf16.msra.mxu0 %v348
    %448 = vmatpush.bf16.msra.mxu0 %v347
    %449 = vmatpush.bf16.msra.mxu0 %v346
    %450 = vmatmul.bf16.gmra.mxu0 %v142
    %v451 = vpop.f32.mrf.mxu0
    %v452 = vadd.f32 %v131, %v451
    %v453 = vpop.f32.mrf.mxu0
    %454 = vdwg.mxu0
    %455 = vmatpush.bf16.msra.mxu0 %v361
    %456 = vmatpush.bf16.msra.mxu0 %v360
    %457 = vmatpush.bf16.msra.mxu0 %v359
    %458 = vmatpush.bf16.msra.mxu0 %v358
    %459 = vmatpush.bf16.msra.mxu0 %v357
    %460 = vmatpush.bf16.msra.mxu0 %v356
    %461 = vmatpush.bf16.msra.mxu0 %v355
    %462 = vmatpush.bf16.msra.mxu0 %v354
    %463 = vmatmul.bf16.gmra.mxu0 %v143
    %v464 = vpop.f32.mrf.mxu0
    %v465 = vadd.f32 %v452, %v464
    %v466 = vpop.f32.mrf.mxu0
    %467 = vdwg.mxu0
    %468 = vmatpush.bf16.msra.mxu0 %v369
    %469 = vmatpush.bf16.msra.mxu0 %v368
    %470 = vmatpush.bf16.msra.mxu0 %v367
    %471 = vmatpush.bf16.msra.mxu0 %v366
    %472 = vmatpush.bf16.msra.mxu0 %v365
    %473 = vmatpush.bf16.msra.mxu0 %v364
    %474 = vmatpush.bf16.msra.mxu0 %v363
    %475 = vmatpush.bf16.msra.mxu0 %v362
    %476 = vmatmul.bf16.gmra.mxu0 %v144
    %v477 = vpop.f32.mrf.mxu0
    %v478 = vadd.f32 %v465, %v477
    %v479 = vpop.f32.mrf.mxu0
    %480 = vdwg.mxu0
    %481 = vmatpush.bf16.msra.mxu0 %v377
    %482 = vmatpush.bf16.msra.mxu0 %v376
    %483 = vmatpush.bf16.msra.mxu0 %v375
    %484 = vmatpush.bf16.msra.mxu0 %v374
    %485 = vmatpush.bf16.msra.mxu0 %v373
    %486 = vmatpush.bf16.msra.mxu0 %v372
    %487 = vmatpush.bf16.msra.mxu0 %v371
    %488 = vmatpush.bf16.msra.mxu0 %v370
    %489 = vmatmul.bf16.gmra.mxu0 %v145
    %v490 = vpop.f32.mrf.mxu0
    %v491 = vadd.f32 %v478, %v490
    %v492 = vpop.f32.mrf.mxu0
    %493 = vdwg.mxu0
    %494 = vmatpush.bf16.msra.mxu0 %v385
    %495 = vmatpush.bf16.msra.mxu0 %v384
    %496 = vmatpush.bf16.msra.mxu0 %v383
    %497 = vmatpush.bf16.msra.mxu0 %v382
    %498 = vmatpush.bf16.msra.mxu0 %v381
    %499 = vmatpush.bf16.msra.mxu0 %v380
    %500 = vmatpush.bf16.msra.mxu0 %v379
    %501 = vmatpush.bf16.msra.mxu0 %v378
    %502 = vmatmul.bf16.gmra.mxu0 %v146
    %v503 = vpop.f32.mrf.mxu0
    %v504 = vadd.f32 %v491, %v503
    %v505 = vpop.f32.mrf.mxu0
    %506 = vdwg.mxu0
    %507 = vmatpush.bf16.msra.mxu0 %v393
    %508 = vmatpush.bf16.msra.mxu0 %v392
    %509 = vmatpush.bf16.msra.mxu0 %v391
    %510 = vmatpush.bf16.msra.mxu0 %v390
    %511 = vmatpush.bf16.msra.mxu0 %v389
    %512 = vmatpush.bf16.msra.mxu0 %v388
    %513 = vmatpush.bf16.msra.mxu0 %v387
    %514 = vmatpush.bf16.msra.mxu0 %v386
    %515 = vmatmul.bf16.gmra.mxu0 %v147
    %v516 = vpop.f32.mrf.mxu0
    %v517 = vadd.f32 %v504, %v516
    %v518 = vpop.f32.mrf.mxu0
    %519 = vdwg.mxu0
    %520 = vst [vmem:[%s3] sm:$0xff] %v517
    // Predicated region
    $region18: #{classifier_forward.1} parent=1 // pred_check
      _
    $region19: #{classifier_forward.1} parent=1 // pred_check_branch
      %522 = sbr.rel (0) target = $region21
    $region20: #{classifier_forward.1} parent=1 // pred_region
      _
    $region21: #{classifier_forward.1} parent=1 // pred_fallthru
      _
    // Predicated region
    $region22: #{classifier_forward.1} parent=1 // pred_check
      _
    $region23: #{classifier_forward.1} parent=1 // pred_check_branch
      %524 = sbr.rel (0) target = $region25
    $region24: #{classifier_forward.1} parent=1 // pred_region
      _
    $region25: #{classifier_forward.1} parent=1 // pred_fallthru
      _
    %525 = vsyncpa [#allocation3], 1

</llo_original>
